<compile_context>
chip_gen: v7x
topology: tpu7x:2x2x1
jax: 0.10.0
libtpu: 0.0.40
codegen_flags: <defaults>
</compile_context>

<pallas_src>
import functools

import jax
import jax.numpy as jnp
from jax.experimental import pallas as pl
from jax.experimental.pallas import tpu as pltpu


def _wfc_kernel(t_ref, m_ref, wfull_ref, sel_ref, out_ref, *,
                W, count, inv_denom, apply_softmax):
    """Folded bilinear WFC violation expectation for a block of batches.

    t_ref:     (Bt, Cin, P)   activations, P = H*W on the lane axis
    m_ref:     (2, P)         row 0: horizontal-pair validity, row 1: vertical
    wfull_ref: (2K, 2K)       block-diag tiled [Wx | Wy] weights, K = Bt*count
    sel_ref:   (2K, Bt)       column -> batch grouping matrix (0/1)
    out_ref:   (1, 1, Bt)     per-batch result (Bt on lanes)
    """
    Bt, Cin, P = t_ref.shape
    K = Bt * count

    t3 = t_ref[...]                                         # (Bt, Cin, P)

    if apply_softmax:
        # Fused softmax over the FULL channel dim (matches torch.softmax(t, 1)).
        x = t3.astype(jnp.float32)
        x = x - jnp.max(x, axis=1, keepdims=True)           # sublane reduce
        e = jnp.exp(x)                                      # EUP
        t3 = (e / jnp.sum(e, axis=1, keepdims=True)).astype(t_ref.dtype)

    # Slice to the `count` WFC channels and merge (batch, channel) rows.
    # count is normally a multiple of 8 so the merge is layout-preserving.
    t2 = t3[:, :count, :].reshape(K, P)                     # (K, P)

    m = m_ref[...]                                          # (2, P)
    mh = m[0:1, :]                                          # horizontal validity
    mv = m[1:2, :]                                          # vertical validity

    # Neighbor operands via XLU lane rotation (shift P-1 == -1, P-W == -W).
    # Wrapped positions are zeroed by the masks on the left operands, so the
    # contraction length stays exactly P.
    t_right = pltpu.roll(t2, shift=P - 1, axis=1)           # value at p+1
    t_bottom = pltpu.roll(t2, shift=P - W, axis=1)          # value at p+W

    lhs = jnp.concatenate([t2 * mh, t2 * mv], axis=0)       # (2K, P)
    rhs = jnp.concatenate([t_right, t_bottom], axis=0)      # (2K, P)

    # One folded Gram for all batches and both directions (MXU, f32 accumulate).
    g = jax.lax.dot_general(
        lhs, rhs,
        dimension_numbers=(((1,), (1,)), ((), ())),
        preferred_element_type=jnp.float32)                 # (2K, 2K)

    # Weight: zero for cross-batch / cross-direction blocks, Wx / Wy otherwise.
    weighted = wfull_ref[...] * g                           # (2K, 2K)

    # Group columns per batch (tiny matmul), then reduce rows -> (1, Bt).
    grouped = jax.lax.dot_general(
        weighted, sel_ref[...],
        dimension_numbers=(((1,), (0,)), ((), ())),
        preferred_element_type=jnp.float32)                 # (2K, Bt)
    per_b = jnp.sum(grouped, axis=0, keepdims=True)         # (1, Bt)

    out_ref[...] = (per_b * inv_denom)[None].astype(out_ref.dtype)  # (1, 1, Bt)


def _vmem_capacity_bytes():
    try:
        cap = int(pltpu.get_tpu_info().vmem_capacity_bytes)
        if cap > 0:
            return cap
    except Exception:
        pass
    return 64 * 1024 * 1024        # conservative default (v7x per-core VMEM)


def _tpu_generation():
    """(mxu_tile_rows, has_two_tensorcores) — best-effort, safe defaults."""
    try:
        kind = jax.devices()[0].device_kind.lower()
    except Exception:
        return 256, False
    rows = 128 if any(s in kind for s in ("v2", "v3", "v4", "v5")) else 256
    two_core = "7" in kind
    return rows, two_core


def _pick_batch_tile(B, count, c_in, P, in_itemsize, vmem_budget, target_rows):
    """Largest divisor Bt of B such that the folded Gram (2*Bt*count rows)
    fills — but does not exceed — one MXU output tile and the per-step VMEM
    footprint (double-buffered input + in-kernel temporaries) fits."""
    def footprint(bt):
        k = bt * count
        in_bytes = 2 * bt * c_in * P * in_itemsize          # double-buffered input
        temps = 10 * k * P * 4                              # masked/rolled/concat temps
        small = 3 * (2 * k) * (2 * k) * 4 + 4 * P * in_itemsize
        return in_bytes + temps + small

    best = 1
    for bt in range(1, B + 1):
        if B % bt:
            continue
        if bt > 1 and 2 * bt * count > target_rows:
            continue
        if bt > 1 and footprint(bt) > vmem_budget:
            continue
        best = bt
    return best


def wfc_loss_bilinear(t_nchw, wfc_mat_x, wfc_mat_y, softmax=False):
    """JAX/Pallas equivalent of WFCLossBilinear.forward(t, softmax)."""
    count = wfc_mat_x.shape[0]
    assert (wfc_mat_x.shape[0] == wfc_mat_x.shape[1]
            and wfc_mat_y.shape[0] == wfc_mat_y.shape[1]
            and wfc_mat_x.shape[0] == wfc_mat_y.shape[0]), "WFC matrix size mismatch"

    B, Cfull, H, W = t_nchw.shape
    assert Cfull >= count
    assert H >= 2 and W >= 2, "need at least a 2x2 spatial grid"
    P = H * W

    # softmax is over the FULL channel dim before slicing to `count`, so keep
    # all channels when it must be fused; otherwise drop unused channels now.
    t_in = t_nchw if softmax else t_nchw[:, :count]
    Cin = t_in.shape[1]

    # bf16 passthrough (MXU contracts bf16 with f32 accumulation); everything
    # else is promoted to f32.
    work_dtype = jnp.bfloat16 if t_in.dtype == jnp.bfloat16 else jnp.float32
    t_flat = t_in.reshape(B, Cin, P).astype(work_dtype)      # lane-dense layout

    wx = (1.0 - jnp.asarray(wfc_mat_x, jnp.float32))
    wy = (1.0 - jnp.asarray(wfc_mat_y, jnp.float32))

    # Full-length-P validity masks (pair (p, p+1) / (p, p+W)); the rolled wrap
    # positions are covered by the same masks.
    pos = jnp.arange(P, dtype=jnp.int32)
    mh = (pos % W != (W - 1)).astype(work_dtype)
    mv = (pos < (H - 1) * W).astype(work_dtype)
    masks = jnp.stack([mh, mv], axis=0)                      # (2, P)

    denom = float(H * (W - 1) + (H - 1) * W)
    inv_denom = 1.0 / denom

    # Generation-aware batch-tile sizing.
    target_rows, two_core = _tpu_generation()
    vmem_cap = _vmem_capacity_bytes()
    Bt = _pick_batch_tile(B, count, Cin, P, t_flat.dtype.itemsize,
                          vmem_budget=vmem_cap // 2, target_rows=target_rows)
    if two_core and B // Bt == 1 and B % 2 == 0 and B >= 2:
        Bt = B // 2                 # keep both TensorCores busy on the grid axis
    nb = B // Bt
    K = Bt * count

    # Block-diagonal-tiled bilinear weights and the column->batch grouping
    # matrix (both resident in VMEM across the whole grid).
    eye_b = jnp.eye(Bt, dtype=jnp.float32)
    wxb = jnp.kron(eye_b, wx)                                # (K, K)
    wyb = jnp.kron(eye_b, wy)                                # (K, K)
    z = jnp.zeros((K, K), jnp.float32)
    wfull = jnp.block([[wxb, z], [z, wyb]])                  # (2K, 2K)
    ridx = jnp.arange(2 * K, dtype=jnp.int32) % K
    sel = (ridx[:, None] // count
           == jnp.arange(Bt, dtype=jnp.int32)[None, :]).astype(jnp.float32)  # (2K, Bt)

    kernel = functools.partial(_wfc_kernel, W=W, count=count,
                               inv_denom=inv_denom, apply_softmax=bool(softmax))

    vmem_limit = int(min(max(vmem_cap * 3 // 4, 32 * 1024 * 1024),
                         128 * 1024 * 1024))

    # TODO(synk): for very large H*W add a spatial-tile reduction grid axis
    # (needs a W-position halo for the vertical pairs); the current version
    # keeps the full spatial extent per block, sized against the VMEM budget.
    out = pl.pallas_call(
        kernel,
        out_shape=jax.ShapeDtypeStruct((nb, 1, Bt), jnp.float32),
        grid=(nb,),
        in_specs=[
            pl.BlockSpec((Bt, Cin, P), lambda b: (b, 0, 0)),   # activations (one read)
            pl.BlockSpec((2, P), lambda b: (0, 0)),            # masks (resident)
            pl.BlockSpec((2 * K, 2 * K), lambda b: (0, 0)),    # folded weights (resident)
            pl.BlockSpec((2 * K, Bt), lambda b: (0, 0)),       # grouping matrix (resident)
        ],
        out_specs=pl.BlockSpec((1, 1, Bt), lambda b: (b, 0, 0)),
        compiler_params=pltpu.CompilerParams(
            dimension_semantics=("parallel",),
            vmem_limit_bytes=vmem_limit),
    )(t_flat, masks, wfull, sel)

    return out.reshape(B)


def _reference(t, cx, cy):
    """Pure-JAX reference matching the PyTorch forward (no softmax applied)."""
    count = cx.shape[0]
    wx = 1.0 - cx
    wy = 1.0 - cy
    tt = t[:, :count]
    x_l = jnp.transpose(tt[:, :, :, :-1], (0, 2, 3, 1))   # b y x i
    x_r = jnp.transpose(tt[:, :, :, 1:], (0, 2, 3, 1))
    sum_x = jnp.einsum("byxi,ij,byxj->b", x_l, wx, x_r)
    y_t = jnp.transpose(tt[:, :, :-1, :], (0, 2, 3, 1))
    y_b = jnp.transpose(tt[:, :, 1:, :], (0, 2, 3, 1))
    sum_y = jnp.einsum("byxi,ij,byxj->b", y_t, wy, y_b)
    denom = x_l.shape[1] * x_l.shape[2] + y_t.shape[1] * y_t.shape[2]
    return (sum_x + sum_y) / denom


if __name__ == "__main__":
    key = jax.random.PRNGKey(0)
    B, C, H, W = 2, 8, 16, 16       # channels == number of WFC tile types (count)
    count = C

    k_t, k_x, k_y = jax.random.split(key, 3)
    t = jax.random.uniform(k_t, (B, C, H, W), dtype=jnp.float32)
    wfc_mat_x = (jax.random.uniform(k_x, (count, count)) > 0.5).astype(jnp.float32)
    wfc_mat_y = (jax.random.uniform(k_y, (count, count)) > 0.5).astype(jnp.float32)

    # softmax=False path
    out = wfc_loss_bilinear(t, wfc_mat_x, wfc_mat_y, softmax=False)
    out = jax.block_until_ready(out)
    expected = _reference(t, wfc_mat_x, wfc_mat_y)
    assert out.shape == (B,)
    assert jnp.allclose(out, expected, rtol=1e-3, atol=1e-3), (out, expected)

    # softmax=True path (softmax fused into the kernel prologue)
    out_sm = wfc_loss_bilinear(t, wfc_mat_x, wfc_mat_y, softmax=True)
    out_sm = jax.block_until_ready(out_sm)
    expected_sm = _reference(jax.nn.softmax(t, axis=1), wfc_mat_x, wfc_mat_y)
    assert jnp.allclose(out_sm, expected_sm, rtol=1e-3, atol=1e-3), (out_sm, expected_sm)

    print("KERNEL_OK")
</pallas_src>

<mosaic_0001>
module attributes {stable_mosaic.version = 11 : i64} {
  func.func @_wfc_kernel(%arg0: i32, %arg1: memref<2x8x256xf32, #tpu.memory_space<vmem>>, %arg2: memref<2x256xf32, #tpu.memory_space<vmem>>, %arg3: memref<32x32xf32, #tpu.memory_space<vmem>>, %arg4: memref<32x2xf32, #tpu.memory_space<vmem>>, %arg5: memref<1x1x2xf32, #tpu.memory_space<vmem>>) attributes {dimension_semantics = [#tpu.dimension_semantics<parallel>], iteration_bounds = array<i64: 1>, scalar_prefetch = 0 : i64, scratch_operands = 0 : i64, tpu.core_type = #tpu.core_type<tc>, window_params = [{transform_indices = @transform_0, window_bounds = array<i64: 2, 8, 256>}, {pipeline_mode = #tpu.pipeline_mode<synchronous>, transform_indices = @transform_1, window_bounds = array<i64: 2, 256>}, {pipeline_mode = #tpu.pipeline_mode<synchronous>, transform_indices = @transform_2, window_bounds = array<i64: 32, 32>}, {pipeline_mode = #tpu.pipeline_mode<synchronous>, transform_indices = @transform_3, window_bounds = array<i64: 32, 2>}, {transform_indices = @transform_4, window_bounds = array<i64: 1, 1, 2>}]} {
    %c0 = arith.constant 0 : index
    %c0_0 = arith.constant 0 : index
    %c0_1 = arith.constant 0 : index
    %0 = vector.load %arg1[%c0, %c0_0, %c0_1] : memref<2x8x256xf32, #tpu.memory_space<vmem>>, vector<2x8x256xf32>
    %1 = vector.shape_cast %0 : vector<2x8x256xf32> to vector<16x256xf32>
    %c0_2 = arith.constant 0 : index
    %c0_3 = arith.constant 0 : index
    %2 = vector.load %arg2[%c0_2, %c0_3] : memref<2x256xf32, #tpu.memory_space<vmem>>, vector<2x256xf32>
    %3 = vector.extract_strided_slice %2 {offsets = [0, 0], sizes = [1, 256], strides = [1, 1]} : vector<2x256xf32> to vector<1x256xf32>
    %4 = vector.extract_strided_slice %2 {offsets = [1, 0], sizes = [1, 256], strides = [1, 1]} : vector<2x256xf32> to vector<1x256xf32>
    %c255_i32 = arith.constant 255 : i32
    %5 = tpu.dynamic_rotate %1 by %c255_i32 dim 1 : vector<16x256xf32>, i32 -> vector<16x256xf32>
    %c240_i32 = arith.constant 240 : i32
    %6 = tpu.dynamic_rotate %1 by %c240_i32 dim 1 : vector<16x256xf32>, i32 -> vector<16x256xf32>
    %7 = vector.broadcast %3 : vector<1x256xf32> to vector<16x256xf32>
    %8 = arith.mulf %1, %7 : vector<16x256xf32>
    %9 = vector.broadcast %4 : vector<1x256xf32> to vector<16x256xf32>
    %10 = arith.mulf %1, %9 : vector<16x256xf32>
    %11 = tpu.concatenate %8, %10 in 0 : vector<16x256xf32>, vector<16x256xf32> -> vector<32x256xf32>
    %12 = tpu.concatenate %5, %6 in 0 : vector<16x256xf32>, vector<16x256xf32> -> vector<32x256xf32>
    %cst = arith.constant dense<0.000000e+00> : vector<32x32xf32>
    %13 = tpu.matmul %11, %12, %cst {dimension_numbers = #tpu.dot_dimension_numbers<[1], [1], [0], [0], [0, 0, 1, 0], [], []>} : vector<32x256xf32>, vector<32x256xf32>, vector<32x32xf32> -> vector<32x32xf32>
    %c0_4 = arith.constant 0 : index
    %c0_5 = arith.constant 0 : index
    %14 = vector.load %arg3[%c0_4, %c0_5] : memref<32x32xf32, #tpu.memory_space<vmem>>, vector<32x32xf32>
    %15 = arith.mulf %14, %13 : vector<32x32xf32>
    %c0_6 = arith.constant 0 : index
    %c0_7 = arith.constant 0 : index
    %16 = vector.load %arg4[%c0_6, %c0_7] : memref<32x2xf32, #tpu.memory_space<vmem>>, vector<32x2xf32>
    %cst_8 = arith.constant dense<0.000000e+00> : vector<32x2xf32>
    %17 = tpu.matmul %15, %16, %cst_8 {dimension_numbers = #tpu.dot_dimension_numbers<[1], [0], [0], [1], [0, 0, 1, 1], [], []>} : vector<32x32xf32>, vector<32x2xf32>, vector<32x2xf32> -> vector<32x2xf32>
    %cst_9 = arith.constant dense<0.000000e+00> : vector<2xf32>
    %18 = vector.multi_reduction <add>, %17, %cst_9 [0] : vector<32x2xf32> to vector<2xf32>
    %19 = vector.shape_cast %18 : vector<2xf32> to vector<1x2xf32>
    %cst_10 = arith.constant 0.00208333344 : f32
    %20 = vector.broadcast %cst_10 : f32 to vector<1x2xf32>
    %21 = arith.mulf %19, %20 : vector<1x2xf32>
    %22 = vector.shape_cast %21 : vector<1x2xf32> to vector<1x1x2xf32>
    %c0_11 = arith.constant 0 : index
    %c0_12 = arith.constant 0 : index
    %c0_13 = arith.constant 0 : index
    %23 = vector.load %arg5[%c0_11, %c0_12, %c0_13] : memref<1x1x2xf32, #tpu.memory_space<vmem>>, vector<1x1x2xf32>
    tpu.vector_store %arg5[%c0_11, %c0_12, %c0_13], %22 {strides = array<i32>} : memref<1x1x2xf32, #tpu.memory_space<vmem>>, vector<1x1x2xf32>,
    return
  }
  func.func @transform_0(%arg0: i32) -> (i32, i32, i32) {
    %c0_i32 = arith.constant 0 : i32
    %c0_i32_0 = arith.constant 0 : i32
    %c0_i32_1 = arith.constant 0 : i32
    return %arg0, %c0_i32, %c0_i32_0 : i32, i32, i32
  }
  func.func @transform_1(%arg0: i32) -> (i32, i32) {
    %c0_i32 = arith.constant 0 : i32
    %c0_i32_0 = arith.constant 0 : i32
    %c0_i32_1 = arith.constant 0 : i32
    return %c0_i32, %c0_i32_0 : i32, i32
  }
  func.func @transform_2(%arg0: i32) -> (i32, i32) {
    %c0_i32 = arith.constant 0 : i32
    %c0_i32_0 = arith.constant 0 : i32
    %c0_i32_1 = arith.constant 0 : i32
    return %c0_i32, %c0_i32_0 : i32, i32
  }
  func.func @transform_3(%arg0: i32) -> (i32, i32) {
    %c0_i32 = arith.constant 0 : i32
    %c0_i32_0 = arith.constant 0 : i32
    %c0_i32_1 = arith.constant 0 : i32
    return %c0_i32, %c0_i32_0 : i32, i32
  }
  func.func @transform_4(%arg0: i32) -> (i32, i32, i32) {
    %c0_i32 = arith.constant 0 : i32
    %c0_i32_0 = arith.constant 0 : i32
    %c0_i32_1 = arith.constant 0 : i32
    return %arg0, %c0_i32, %c0_i32_0 : i32, i32, i32
  }
}

</mosaic_0001>

<llo_original>
// kernel: tpu_custom_call.1
$region0: #{tpu_custom_call.1}
  #allocation0 [shape = 'u32[]', space=smem, size = 0x4, offset = 0x4, fixed_abs, tag = 'smem constant byte address 0x4 - core index']
  #allocation1 [shape = 'u32[144,128]{1,0:T(1,128)}', space=vmem, size = 0x12000, scoped, tag = 'internal scratch']
  %s0 = inlined_call_operand.vmem [shape: f32[2,8,256], index: 0, kind: input, shape index: {}]
  %s1 = inlined_call_operand.vmem [shape: f32[2,256], index: 1, kind: input, shape index: {}]
  %s2 = inlined_call_operand.hbm [shape: f32[32,32], index: 2, kind: input, shape index: {}]
  %s3 = inlined_call_operand.vmem [shape: f32[32,2], index: 3, kind: input, shape index: {}]
  %s4 = inlined_call_operand.hbm [shape: f32[1,1,2], index: 4, kind: output, shape index: {}]
  %s5 = sld [smem:[#allocation0]]
  $region30: #{tpu_custom_call.1} parent=0
    _
  %s7 = ssub.s32 1, %s5
  %s8 = scalar_select 0, %s7, %s5
  $region1: #{tpu_custom_call.1} parent=0
    #allocation2 [shape = 'u8[16384]{0}', space=vmem, size = 0x4000, scoped, tag = 'input window, operand 2, single buffered']
    #allocation3 [shape = 's32[1]{0}', space=sflag, size = 0x4, scoped, tag = 'scoped memory for tpu_custom_call.1']
    #allocation4 [shape = 's32[1]{0}', space=sflag, size = 0x4, scoped, tag = 'scoped memory for tpu_custom_call.1']
    #allocation5 [shape = 'u8[512]{0}', space=vmem, size = 0x400, scoped, tag = 'output window, operand 0, single buffered']
    %9 = vsyncpa [#allocation3], 0
    %10 = vsyncpa [#allocation4], 0
    // Predicated region
    $region2: #{tpu_custom_call.1} parent=1 // pred_check
      _
    $region3: #{tpu_custom_call.1} parent=1 // pred_check_branch
      %12 = sbr.rel (0) target = $region5
    $region4: #{tpu_custom_call.1} parent=1 // pred_region
      _
    $region5: #{tpu_custom_call.1} parent=1 // pred_fallthru
      _
    // Predicated region
    $region6: #{tpu_custom_call.1} parent=1 // pred_check
      _
    $region7: #{tpu_custom_call.1} parent=1 // pred_check_branch
      %14 = sbr.rel (0) target = $region9
    $region8: #{tpu_custom_call.1} parent=1 // pred_region
      _
    $region9: #{tpu_custom_call.1} parent=1 // pred_fallthru
      _
    // Predicated region
    $region10: #{tpu_custom_call.1} parent=1 // pred_check
      _
    $region11: #{tpu_custom_call.1} parent=1 // pred_check_branch
      %16 = sbr.rel (0) target = $region13
    $region12: #{tpu_custom_call.1} parent=1 // pred_region
      %s18 = ssub.s32 512, 512
      %19 = vsyncadd [#allocation3], %s18
      %s20 = sshll.u32 [#allocation2], 4
      %s21 = int_to_ptr.vmem [resolvable:$true] %s20
      %26 = dma.hbm_to_vmem [thread:$0]  %s2, 512, %s21, [#allocation3], 128, 128, 8
    $region13: #{tpu_custom_call.1} parent=1 // pred_fallthru
      _
    // Predicated region
    $region14: #{tpu_custom_call.1} parent=1 // pred_check
      _
    $region15: #{tpu_custom_call.1} parent=1 // pred_check_branch
      %28 = sbr.rel (0) target = $region17
    $region16: #{tpu_custom_call.1} parent=1 // pred_region
      _
    $region17: #{tpu_custom_call.1} parent=1 // pred_fallthru
      _
    // Predicated region
    $region18: #{tpu_custom_call.1} parent=1 // pred_check
      _
    $region19: #{tpu_custom_call.1} parent=1 // pred_check_branch
      %30 = sbr.rel (0) target = $region21
    $region20: #{tpu_custom_call.1} parent=1 // pred_region
      %31 = dma.done [#allocation3], 512
    $region21: #{tpu_custom_call.1} parent=1 // pred_fallthru
      _
    %v32 = vld [vmem:[%s0] sm:$0xff]
    %v33 = vld [vmem:[%s0 + $0x8] sm:$0xff]
    %v34 = vld [vmem:[%s0 + $0x10] sm:$0xff]
    %v35 = vld [vmem:[%s0 + $0x18] sm:$0xff]
    %v36 = vld [vmem:[%s1] sm:$0xf]
    %37 = vrot.lane.b32.xlu0 %v32, 127
    %v38 = vpop.permute.xlu0 %37
    %39 = vrot.lane.b32.xlu0 %v34, 127
    %v40 = vpop.permute.xlu0 %39
    %41 = vrot.lane.b32.xlu0 %v33, 127
    %v42 = vpop.permute.xlu0 %41
    %43 = vrot.lane.b32.xlu0 %v35, 127
    %v44 = vpop.permute.xlu0 %43
    %v45 = vlaneseq
    %v46 = vand.u32 %v45, 127
    %vm47 = vcmp.lt.s32.totalorder %v46, 127
    %v48 = vsel %vm47, %v38, %v42
    %v49 = vsel %vm47, %v40, %v44
    %v50 = vsel %vm47, %v42, %v38
    %v51 = vsel %vm47, %v44, %v40
    %52 = vrot.lane.b32.xlu0 %v32, 112
    %v53 = vpop.permute.xlu0 %52
    %54 = vrot.lane.b32.xlu0 %v34, 112
    %v55 = vpop.permute.xlu0 %54
    %56 = vrot.lane.b32.xlu0 %v33, 112
    %v57 = vpop.permute.xlu0 %56
    %58 = vrot.lane.b32.xlu0 %v35, 112
    %v59 = vpop.permute.xlu0 %58
    %vm60 = vcmp.lt.s32.totalorder %v46, 112
    %v61 = vsel %vm60, %v53, %v57
    %v62 = vsel %vm60, %v55, %v59
    %v63 = vsel %vm60, %v57, %v53
    %v64 = vsel %vm60, %v59, %v55
    %v66 = vlaneseq
    %v67 = vshrl.u32 %v66, 7
    %v68 = vsub.s32 0, %v67
    %v69 = vrot.slane %v36, %v68
    %v70 = vlaneseq
    %v71 = vshrl.u32 %v70, 7
    %v72 = vsub.s32 2, %v71
    %v73 = vrot.slane %v36, %v72
    %v76 = vlaneseq
    %v77 = vshrl.u32 %v76, 7
    %v78 = vsub.s32 0, %v77
    %v79 = vrot.slane %v69, %v78
    %v80 = vlaneseq
    %v81 = vshrl.u32 %v80, 7
    %v82 = vsub.s32 0, %v81
    %v83 = vrot.slane %v73, %v82
    %v84 = vmul.f32 %v32, %v79
    %v85 = vmul.f32 %v33, %v83
    %v86 = vmul.f32 %v34, %v79
    %v87 = vmul.f32 %v35, %v83
    %v88 = vlaneseq
    %v89 = vshrl.u32 %v88, 7
    %v90 = vsub.s32 1, %v89
    %v91 = vrot.slane %v36, %v90
    %v92 = vlaneseq
    %v93 = vshrl.u32 %v92, 7
    %v94 = vsub.s32 3, %v93
    %v95 = vrot.slane %v36, %v94
    %v98 = vlaneseq
    %v99 = vshrl.u32 %v98, 7
    %v100 = vsub.s32 1, %v99
    %v101 = vrot.slane %v91, %v100
    %v102 = vlaneseq
    %v103 = vshrl.u32 %v102, 7
    %v104 = vsub.s32 1, %v103
    %v105 = vrot.slane %v95, %v104
    %v106 = vmul.f32 %v32, %v101
    %v107 = vmul.f32 %v33, %v105
    %v108 = vmul.f32 %v34, %v101
    %v109 = vmul.f32 %v35, %v105
    %110 = vmatprep.subr.mxu0 %v50
    %111 = vmatpush1.xpose.msra.mxu0 %v48
    %112 = vmatprep.subr.mxu0 %v51
    %113 = vmatpush1.xpose.msra.mxu0 %v49
    %114 = vmatprep.subr.mxu0 %v63
    %115 = vmatpush1.xpose.msra.mxu0 %v61
    %116 = vmatprep.subr.mxu0 %v64
    %117 = vmatpush1.xpose.msra.mxu0 %v62
    %118 = vmatprep.subr.mxu0 0.0
    %119 = vmatpush1.xpose.msra.mxu0 0.0
    %120 = vmatprep.subr.mxu0 0.0
    %121 = vmatpush1.xpose.msra.mxu0 0.0
    %122 = vmatprep.subr.mxu0 0.0
    %123 = vmatpush1.xpose.msra.mxu0 0.0
    %124 = vmatprep.subr.mxu0 0.0
    %125 = vmatpush1.xpose.msra.mxu0 0.0
    %126 = vmatprep.subr.mxu0 0.0
    %127 = vmatpush1.xpose.msra.mxu0 0.0
    %128 = vmatprep.subr.mxu0 0.0
    %129 = vmatpush1.xpose.msra.mxu0 0.0
    %130 = vmatprep.subr.mxu0 0.0
    %131 = vmatpush1.xpose.msra.mxu0 0.0
    %132 = vmatprep.subr.mxu0 0.0
    %133 = vmatpush1.xpose.msra.mxu0 0.0
    %134 = vmatprep.subr.mxu0 0.0
    %135 = vmatpush1.xpose.msra.mxu0 0.0
    %136 = vmatprep.subr.mxu0 0.0
    %137 = vmatpush1.xpose.msra.mxu0 0.0
    %138 = vmatprep.subr.mxu0 0.0
    %139 = vmatpush1.xpose.msra.mxu0 0.0
    %140 = vmatprep.subr.mxu0 0.0
    %141 = vmatpush1.xpose.msra.mxu0 0.0
    %142 = vmatprep.subr.mxu0 0.0
    %143 = vmatpush1.xpose.msra.mxu0 0.0
    %144 = vmatprep.subr.mxu0 0.0
    %145 = vmatpush1.xpose.msra.mxu0 0.0
    %146 = vmatprep.subr.mxu0 0.0
    %147 = vmatpush1.xpose.msra.mxu0 0.0
    %148 = vmatprep.subr.mxu0 0.0
    %149 = vmatpush1.xpose.msra.mxu0 0.0
    %150 = vmatprep.subr.mxu0 0.0
    %151 = vmatpush1.xpose.msra.mxu0 0.0
    %152 = vmatprep.subr.mxu0 0.0
    %153 = vmatpush1.xpose.msra.mxu0 0.0
    %154 = vmatprep.subr.mxu0 0.0
    %155 = vmatpush1.xpose.msra.mxu0 0.0
    %156 = vmatprep.subr.mxu0 0.0
    %157 = vmatpush1.xpose.msra.mxu0 0.0
    %158 = vmatprep.subr.mxu0 0.0
    %159 = vmatpush1.xpose.msra.mxu0 0.0
    %160 = vmatprep.subr.mxu0 0.0
    %161 = vmatpush1.xpose.msra.mxu0 0.0
    %162 = vmatprep.subr.mxu0 0.0
    %163 = vmatpush1.xpose.msra.mxu0 0.0
    %164 = vmatprep.subr.mxu0 0.0
    %165 = vmatpush1.xpose.msra.mxu0 0.0
    %166 = vmatprep.subr.mxu0 0.0
    %167 = vmatpush1.xpose.msra.mxu0 0.0
    %168 = vmatprep.subr.mxu0 0.0
    %169 = vmatpush1.xpose.msra.mxu0 0.0
    %170 = vmatprep.subr.mxu0 0.0
    %171 = vmatpush1.xpose.msra.mxu0 0.0
    %172 = vmatprep.subr.mxu0 0.0
    %173 = vmatpush1.xpose.msra.mxu0 0.0
    %174 = vmatprep.mubr.f32.mxu0 %v85
    %175 = vmatmul.mubr.f32.gmra.mrb[0].mxu0 %v84
    %v176 = vpop.f32.mrb[0].mxu0
    %v177 = vadd.f32 0.0, %v176
    %v178 = vpop.f32.mrb[0].mxu0
    %179 = vmatprep.mubr.f32.mxu0 %v87
    %180 = vmatmul.mubr.f32.gmra.mrb[0].mxu0 %v86
    %v181 = vpop.f32.mrb[0].mxu0
    %v182 = vadd.f32 0.0, %v181
    %v183 = vpop.f32.mrb[0].mxu0
    %184 = vmatprep.mubr.f32.mxu0 %v107
    %185 = vmatmul.mubr.f32.gmra.mrb[0].mxu0 %v106
    %v186 = vpop.f32.mrb[0].mxu0
    %v187 = vadd.f32 0.0, %v186
    %v188 = vpop.f32.mrb[0].mxu0
    %189 = vmatprep.mubr.f32.mxu0 %v109
    %190 = vmatmul.mubr.f32.gmra.mrb[0].mxu0 %v108
    %v191 = vpop.f32.mrb[0].mxu0
    %v192 = vadd.f32 0.0, %v191
    %v193 = vpop.f32.mrb[0].mxu0
    %194 = vdwg.mxu0
    %v195 = vld [vmem:[#allocation2] sm:$0xff]
    %v196 = vld [vmem:[#allocation2 + $0x8] sm:$0xff]
    %v197 = vld [vmem:[#allocation2 + $0x10] sm:$0xff]
    %v198 = vld [vmem:[#allocation2 + $0x18] sm:$0xff]
    %v199 = vmul.f32 %v195, %v177
    %v200 = vmul.f32 %v196, %v182
    %v201 = vmul.f32 %v197, %v187
    %v202 = vmul.f32 %v198, %v192
    %v203 = vld [vmem:[%s3] sm:$0xff]
    %v204 = vld [vmem:[%s3 + $0x8] sm:$0xff]
    %v205 = vld [vmem:[%s3 + $0x10] sm:$0xff]
    %v206 = vld [vmem:[%s3 + $0x18] sm:$0xff]
    %vm207 = vcmask 261120
    %v209 = vsel %vm207, %v199, 0
    %v212 = vsel %vm207, %v200, 0
    %v215 = vsel %vm207, %v201, 0
    %v218 = vsel %vm207, %v202, 0
    %220 = vmatprep.subr.mxu0 0.0
    %221 = vmatpush1.msra.mxu0 %v203
    %222 = vmatprep.subr.mxu0 0.0
    %223 = vmatpush1.msra.mxu0 %v204
    %224 = vmatprep.subr.mxu0 0.0
    %225 = vmatpush1.msra.mxu0 %v205
    %226 = vmatprep.subr.mxu0 0.0
    %227 = vmatpush1.msra.mxu0 %v206
    %228 = vmatprep.subr.mxu0 0.0
    %229 = vmatpush1.msra.mxu0 0.0
    %230 = vmatprep.subr.mxu0 0.0
    %231 = vmatpush1.msra.mxu0 0.0
    %232 = vmatprep.subr.mxu0 0.0
    %233 = vmatpush1.msra.mxu0 0.0
    %234 = vmatprep.subr.mxu0 0.0
    %235 = vmatpush1.msra.mxu0 0.0
    %236 = vmatprep.subr.mxu0 0.0
    %237 = vmatpush1.msra.mxu0 0.0
    %238 = vmatprep.subr.mxu0 0.0
    %239 = vmatpush1.msra.mxu0 0.0
    %240 = vmatprep.subr.mxu0 0.0
    %241 = vmatpush1.msra.mxu0 0.0
    %242 = vmatprep.subr.mxu0 0.0
    %243 = vmatpush1.msra.mxu0 0.0
    %244 = vmatprep.subr.mxu0 0.0
    %245 = vmatpush1.msra.mxu0 0.0
    %246 = vmatprep.subr.mxu0 0.0
    %247 = vmatpush1.msra.mxu0 0.0
    %248 = vmatprep.subr.mxu0 0.0
    %249 = vmatpush1.msra.mxu0 0.0
    %250 = vmatprep.subr.mxu0 0.0
    %251 = vmatpush1.msra.mxu0 0.0
    %252 = vmatprep.subr.mxu0 0.0
    %253 = vmatpush1.msra.mxu0 0.0
    %254 = vmatprep.subr.mxu0 0.0
    %255 = vmatpush1.msra.mxu0 0.0
    %256 = vmatprep.subr.mxu0 0.0
    %257 = vmatpush1.msra.mxu0 0.0
    %258 = vmatprep.subr.mxu0 0.0
    %259 = vmatpush1.msra.mxu0 0.0
    %260 = vmatprep.subr.mxu0 0.0
    %261 = vmatpush1.msra.mxu0 0.0
    %262 = vmatprep.subr.mxu0 0.0
    %263 = vmatpush1.msra.mxu0 0.0
    %264 = vmatprep.subr.mxu0 0.0
    %265 = vmatpush1.msra.mxu0 0.0
    %266 = vmatprep.subr.mxu0 0.0
    %267 = vmatpush1.msra.mxu0 0.0
    %268 = vmatprep.subr.mxu0 0.0
    %269 = vmatpush1.msra.mxu0 0.0
    %270 = vmatprep.subr.mxu0 0.0
    %271 = vmatpush1.msra.mxu0 0.0
    %272 = vmatprep.subr.mxu0 0.0
    %273 = vmatpush1.msra.mxu0 0.0
    %274 = vmatprep.subr.mxu0 0.0
    %275 = vmatpush1.msra.mxu0 0.0
    %276 = vmatprep.subr.mxu0 0.0
    %277 = vmatpush1.msra.mxu0 0.0
    %278 = vmatprep.subr.mxu0 0.0
    %279 = vmatpush1.msra.mxu0 0.0
    %280 = vmatprep.subr.mxu0 0.0
    %281 = vmatpush1.msra.mxu0 0.0
    %282 = vmatprep.subr.mxu0 0.0
    %283 = vmatpush1.msra.mxu0 0.0
    %284 = vmatprep.mubr.f32.mxu0 0.0
    %285 = vmatmul.mubr.f32.gmra.mrb[0].mxu0 %v209
    %v286 = vpop.f32.mrb[0].mxu0
    %v287 = vadd.f32 0.0, %v286
    %v288 = vpop.f32.mrb[0].mxu0
    %289 = vmatprep.mubr.f32.mxu0 0.0
    %290 = vmatmul.mubr.f32.gmra.mrb[0].mxu0 %v212
    %v291 = vpop.f32.mrb[0].mxu0
    %v292 = vadd.f32 0.0, %v291
    %v293 = vpop.f32.mrb[0].mxu0
    %294 = vmatprep.mubr.f32.mxu0 0.0
    %295 = vmatmul.mubr.f32.gmra.mrb[0].mxu0 %v215
    %v296 = vpop.f32.mrb[0].mxu0
    %v297 = vadd.f32 0.0, %v296
    %v298 = vpop.f32.mrb[0].mxu0
    %299 = vmatprep.mubr.f32.mxu0 0.0
    %300 = vmatmul.mubr.f32.gmra.mrb[0].mxu0 %v218
    %v301 = vpop.f32.mrb[0].mxu0
    %v302 = vadd.f32 0.0, %v301
    %v303 = vpop.f32.mrb[0].mxu0
    %304 = vdwg.mxu0
    %vm305 = vcmask 15360
    %v306 = vsel %vm305, %v287, 0.0
    %v307 = vsel %vm305, %v292, 0.0
    %v308 = vadd.f32 %v306, %v307
    %v309 = vsel %vm305, %v297, 0.0
    %v310 = vadd.f32 %v308, %v309
    %v311 = vsel %vm305, %v302, 0.0
    %v312 = vadd.f32 %v310, %v311
    %v313 = vrot.slane %v312, 4
    %v314 = vadd.f32 %v312, %v313
    %v315 = vrot.slane %v314, 2
    %v316 = vadd.f32 %v314, %v315
    %v317 = vrot.slane %v316, 1
    %v318 = vadd.f32 %v316, %v317
    %v319 = vmul.f32 %v318, 0.0020833334
    %vm320 = vcmask 8192
    %321 = vst.msk [vmem:[#allocation5] sm:$0x1] %vm320, %v319
    // Predicated region
    $region22: #{tpu_custom_call.1} parent=1 // pred_check
      _
    $region23: #{tpu_custom_call.1} parent=1 // pred_check_branch
      %323 = sbr.rel (0) target = $region25
    $region24: #{tpu_custom_call.1} parent=1 // pred_region
      %s325 = ssub.s32 16, 16
      %326 = vsyncadd [#allocation4], %s325
      %s328 = sshll.u32 [#allocation5], 4
      %s329 = int_to_ptr.vmem [resolvable:$true] %s328
      %331 = dma.vmem_to_hbm [thread:$0]  %s329, 16, %s4, [#allocation4]
    $region25: #{tpu_custom_call.1} parent=1 // pred_fallthru
      _
    // Predicated region
    $region26: #{tpu_custom_call.1} parent=1 // pred_check
      _
    $region27: #{tpu_custom_call.1} parent=1 // pred_check_branch
      %333 = sbr.rel (0) target = $region29
    $region28: #{tpu_custom_call.1} parent=1 // pred_region
      %334 = dma.done [#allocation4], 16
    $region29: #{tpu_custom_call.1} parent=1 // pred_fallthru
      _
    %335 = vsyncpa [#allocation3], 1
    %336 = vsyncpa [#allocation4], 1

</llo_original>
